<compile_context>
chip_gen: v5e
topology: v5e:2x2
jax: 0.10.0
libtpu: 0.0.40
codegen_flags: <defaults>
</compile_context>

<pallas_src>
import jax
import jax.numpy as jnp
from jax.experimental import pallas as pl
from jax.experimental.pallas import tpu as pltpu


def _stage2_kernel(dist_ref, out_ref, prob_ref):
    # dist_ref / out_ref: (1, 2, rows, lanes) block covering ONLY batch 0.
    # HBM buffers are aliased, so batches 1.. remain untouched in place.
    ch0 = dist_ref[0, 0].astype(jnp.float32)        # (rows, lanes) visit dist
    ch1 = dist_ref[0, 1].astype(jnp.float32)        # (rows, lanes) "outside" dist

    # prob_goal_inside = inner_goal_dist[0, 1].sum()   (pre-normalization)
    prob_ref[0] = jnp.sum(ch1)

    # inner_goal_dist[0, c] /= inner_goal_dist[0, c].max() + 1e-10
    inv0 = pl.reciprocal(jnp.max(ch0, keepdims=True) + 1e-10, approx=False)
    inv1 = pl.reciprocal(jnp.max(ch1, keepdims=True) + 1e-10, approx=False)
    out_ref[0, 0] = (ch0 * inv0).astype(out_ref.dtype)
    out_ref[0, 1] = (ch1 * inv1).astype(out_ref.dtype)


@jax.jit
def _stage2_call(visit_dist_inner):
    B, C, H, W = visit_dist_inner.shape
    # Lane-dense layout: present each (H, W) channel as (rows, 128) if possible.
    if (H * W) % 128 == 0:
        rows, lanes = (H * W) // 128, 128
    else:
        rows, lanes = H, W
    x = visit_dist_inner.reshape(B, C, rows, lanes)

    norm_flat, prob = pl.pallas_call(
        _stage2_kernel,
        out_shape=(
            jax.ShapeDtypeStruct((B, C, rows, lanes), x.dtype),
            jax.ShapeDtypeStruct((1,), jnp.float32),
        ),
        grid=(1,),
        in_specs=[pl.BlockSpec((1, C, rows, lanes), lambda i: (0, 0, 0, 0))],
        out_specs=(
            pl.BlockSpec((1, C, rows, lanes), lambda i: (0, 0, 0, 0)),
            pl.BlockSpec(memory_space=pltpu.MemorySpace.SMEM),
        ),
        input_output_aliases={0: 0},     # in-place, like torch's `/=`
        compiler_params=pltpu.CompilerParams(
            dimension_semantics=("arbitrary",)),
    )(x)

    return norm_flat.reshape(B, C, H, W), prob[0]


def pvn_stage2_keyboard_forward(visit_dist_inner, map_uncoverage, action_cmd=None):
    """JAX/Pallas equivalent of PVN_Stage2_Keyboard.forward.

    The PyTorch forward returns only `action_t`; the in-place normalization of
    the visit distribution, prob_goal_inside, and the display rectangle are
    returned explicitly so the semantics are observable.
    """
    norm_dist, prob_goal_inside = _stage2_call(visit_dist_inner)

    # rectangle = np.zeros([100, 20, 3]); rectangle[int(100*p):, :, 0] = 1.0
    fill_until = (100.0 * prob_goal_inside).astype(jnp.int32)   # int() truncation
    row_ids = jnp.arange(100, dtype=jnp.int32)[:, None]
    red = jnp.where(row_ids >= fill_until, 1.0, 0.0).astype(jnp.float32)
    red = jnp.broadcast_to(red[..., None], (100, 20, 1))
    rectangle = jnp.concatenate([red, jnp.zeros((100, 20, 2), jnp.float32)], axis=-1)

    # TODO(synk): KeyTeleop().get_command() (keyboard input) and
    # Presenter().show_image(...) visualization have no Pallas/JAX equivalent;
    # a deterministic zero action vector is returned instead.
    if action_cmd is None:
        action_cmd = jnp.zeros((4,), jnp.float32)
    action_t = jnp.asarray(action_cmd, jnp.float32)

    del map_uncoverage  # only displayed in the PyTorch forward (no compute)
    return action_t, norm_dist, prob_goal_inside, rectangle


if __name__ == "__main__":
    key = jax.random.PRNGKey(0)
    k1, k2 = jax.random.split(key)

    B, C, H, W = 2, 2, 16, 16
    # visit_dist_r.inner_distribution: per-batch 2-channel spatial distributions
    logits = jax.random.normal(k1, (B, C, H, W), jnp.float32)
    visit_dist_inner = jax.nn.softmax(
        logits.reshape(B, C, -1), axis=-1).reshape(B, C, H, W)
    map_uncoverage = (jax.random.uniform(k2, (B, H, W)) > 0.5).astype(jnp.float32)

    # Deterministic init of the module's only parameter (unused in forward):
    iter_param = jnp.zeros((1,), jnp.float32)

    outs = pvn_stage2_keyboard_forward(visit_dist_inner, map_uncoverage)
    outs = jax.block_until_ready(outs)
    action_t, norm_dist, prob_goal_inside, rectangle = outs

    # light sanity checks (pure JAX reference)
    ref0 = visit_dist_inner[0, 0] / (visit_dist_inner[0, 0].max() + 1e-10)
    ref1 = visit_dist_inner[0, 1] / (visit_dist_inner[0, 1].max() + 1e-10)
    assert jnp.allclose(norm_dist[0, 0], ref0, atol=1e-6)
    assert jnp.allclose(norm_dist[0, 1], ref1, atol=1e-6)
    assert jnp.allclose(norm_dist[1], visit_dist_inner[1], atol=1e-6)
    assert jnp.allclose(prob_goal_inside, visit_dist_inner[0, 1].sum(), atol=1e-6)
    assert rectangle.shape == (100, 20, 3)

    print("KERNEL_OK")
</pallas_src>

<mosaic_0001>
module attributes {stable_mosaic.version = 11 : i64} {
  func.func @_stage2_kernel(%arg0: i32, %arg1: memref<1x2x2x128xf32, #tpu.memory_space<vmem>>, %arg2: memref<1x2x2x128xf32, #tpu.memory_space<vmem>>, %arg3: memref<1xf32, #tpu.memory_space<smem>>) attributes {dimension_semantics = [#tpu.dimension_semantics<arbitrary>], iteration_bounds = array<i64: 1>, scalar_prefetch = 0 : i64, scratch_operands = 0 : i64, tpu.core_type = #tpu.core_type<tc>, window_params = [{transform_indices = @transform_0, window_bounds = array<i64: 1, 2, 2, 128>}, {transform_indices = @transform_1, window_bounds = array<i64: 1, 2, 2, 128>}, {transform_indices = @transform_2, window_bounds = array<i64: 1>}]} {
    %c0 = arith.constant 0 : index
    %c0_0 = arith.constant 0 : index
    %c0_1 = arith.constant 0 : index
    %c0_2 = arith.constant 0 : index
    %0 = vector.load %arg1[%c0, %c0_0, %c0_1, %c0_2] : memref<1x2x2x128xf32, #tpu.memory_space<vmem>>, vector<1x1x2x128xf32>
    %1 = vector.shape_cast %0 : vector<1x1x2x128xf32> to vector<2x128xf32>
    %c0_3 = arith.constant 0 : index
    %c1 = arith.constant 1 : index
    %c0_4 = arith.constant 0 : index
    %c0_5 = arith.constant 0 : index
    %2 = vector.load %arg1[%c0_3, %c1, %c0_4, %c0_5] : memref<1x2x2x128xf32, #tpu.memory_space<vmem>>, vector<1x1x2x128xf32>
    %3 = vector.shape_cast %2 : vector<1x1x2x128xf32> to vector<2x128xf32>
    %4 = vector.shape_cast %3 : vector<2x128xf32> to vector<1x2x128xf32>
    %cst = arith.constant dense<0.000000e+00> : vector<1xf32>
    %5 = vector.multi_reduction <add>, %4, %cst [1, 2] : vector<1x2x128xf32> to vector<1xf32>
    %6 = vector.shape_cast %5 : vector<1xf32> to vector<1x1x1xf32>
    %7 = vector.extract %6[0, 0, 0] : f32 from vector<1x1x1xf32>
    %c0_6 = arith.constant 0 : index
    %8 = memref.load %arg3[%c0_6] : memref<1xf32, #tpu.memory_space<smem>>
    memref.store %7, %arg3[%c0_6] : memref<1xf32, #tpu.memory_space<smem>>
    %9 = vector.shape_cast %1 : vector<2x128xf32> to vector<1x2x128xf32>
    %cst_7 = arith.constant dense<0xFF800000> : vector<1xf32>
    %10 = vector.multi_reduction <maximumf>, %9, %cst_7 [1, 2] : vector<1x2x128xf32> to vector<1xf32>
    %11 = vector.shape_cast %10 : vector<1xf32> to vector<1x1x1xf32>
    %12 = vector.extract %11[0, 0, 0] : f32 from vector<1x1x1xf32>
    %13 = vector.broadcast %12 : f32 to vector<1x1xf32>
    %cst_8 = arith.constant 1.000000e-10 : f32
    %14 = vector.broadcast %cst_8 : f32 to vector<1x1xf32>
    %15 = arith.addf %13, %14 : vector<1x1xf32>
    %16 = tpu.reciprocal %15 : vector<1x1xf32> -> vector<1x1xf32>
    %17 = vector.shape_cast %3 : vector<2x128xf32> to vector<1x2x128xf32>
    %cst_9 = arith.constant dense<0xFF800000> : vector<1xf32>
    %18 = vector.multi_reduction <maximumf>, %17, %cst_9 [1, 2] : vector<1x2x128xf32> to vector<1xf32>
    %19 = vector.shape_cast %18 : vector<1xf32> to vector<1x1x1xf32>
    %20 = vector.extract %19[0, 0, 0] : f32 from vector<1x1x1xf32>
    %21 = vector.broadcast %20 : f32 to vector<1x1xf32>
    %cst_10 = arith.constant 1.000000e-10 : f32
    %22 = vector.broadcast %cst_10 : f32 to vector<1x1xf32>
    %23 = arith.addf %21, %22 : vector<1x1xf32>
    %24 = tpu.reciprocal %23 : vector<1x1xf32> -> vector<1x1xf32>
    %25 = vector.broadcast %16 : vector<1x1xf32> to vector<2x128xf32>
    %26 = arith.mulf %1, %25 : vector<2x128xf32>
    %c0_11 = arith.constant 0 : index
    %c0_12 = arith.constant 0 : index
    %c0_13 = arith.constant 0 : index
    %c0_14 = arith.constant 0 : index
    %27 = vector.load %arg2[%c0_11, %c0_12, %c0_13, %c0_14] : memref<1x2x2x128xf32, #tpu.memory_space<vmem>>, vector<1x1x2x128xf32>
    %28 = vector.shape_cast %27 : vector<1x1x2x128xf32> to vector<2x128xf32>
    %29 = vector.shape_cast %26 : vector<2x128xf32> to vector<1x1x2x128xf32>
    tpu.vector_store %arg2[%c0_11, %c0_12, %c0_13, %c0_14], %29 {strides = array<i32>} : memref<1x2x2x128xf32, #tpu.memory_space<vmem>>, vector<1x1x2x128xf32>,
    %30 = vector.broadcast %24 : vector<1x1xf32> to vector<2x128xf32>
    %31 = arith.mulf %3, %30 : vector<2x128xf32>
    %c0_15 = arith.constant 0 : index
    %c1_16 = arith.constant 1 : index
    %c0_17 = arith.constant 0 : index
    %c0_18 = arith.constant 0 : index
    %32 = vector.load %arg2[%c0_15, %c1_16, %c0_17, %c0_18] : memref<1x2x2x128xf32, #tpu.memory_space<vmem>>, vector<1x1x2x128xf32>
    %33 = vector.shape_cast %32 : vector<1x1x2x128xf32> to vector<2x128xf32>
    %34 = vector.shape_cast %31 : vector<2x128xf32> to vector<1x1x2x128xf32>
    tpu.vector_store %arg2[%c0_15, %c1_16, %c0_17, %c0_18], %34 {strides = array<i32>} : memref<1x2x2x128xf32, #tpu.memory_space<vmem>>, vector<1x1x2x128xf32>,
    return
  }
  func.func @transform_0(%arg0: i32) -> (i32, i32, i32, i32) {
    %c0_i32 = arith.constant 0 : i32
    %c0_i32_0 = arith.constant 0 : i32
    %c0_i32_1 = arith.constant 0 : i32
    %c0_i32_2 = arith.constant 0 : i32
    %c0_i32_3 = arith.constant 0 : i32
    return %c0_i32, %c0_i32_0, %c0_i32_1, %c0_i32_2 : i32, i32, i32, i32
  }
  func.func @transform_1(%arg0: i32) -> (i32, i32, i32, i32) {
    %c0_i32 = arith.constant 0 : i32
    %c0_i32_0 = arith.constant 0 : i32
    %c0_i32_1 = arith.constant 0 : i32
    %c0_i32_2 = arith.constant 0 : i32
    %c0_i32_3 = arith.constant 0 : i32
    return %c0_i32, %c0_i32_0, %c0_i32_1, %c0_i32_2 : i32, i32, i32, i32
  }
  func.func @transform_2(%arg0: i32) -> i32 {
    %c0_i32 = arith.constant 0 : i32
    %c0_i32_0 = arith.constant 0 : i32
    return %c0_i32 : i32
  }
}

</mosaic_0001>

<llo_original>
// kernel: _stage2_call.1
$region0: #{_stage2_call.1}
  #allocation0 [shape = 'u32[]', space=smem, size = 0x4, offset = 0x4, fixed_abs, tag = 'smem constant byte address 0x4 - core index']
  #allocation1 [shape = 'u32[72,128]{1,0:T(1,128)}', space=vmem, size = 0x9000, scoped, tag = 'internal scratch']
  %s0 = inlined_call_operand.vmem [shape: f32[2,2,2,128], index: 0, kind: input, shape index: {}, may-alias: {0,1}]
  %s1 = inlined_call_operand.vmem [shape: f32[2,2,2,128], index: 1, kind: output, shape index: {0}, may-alias: {0,1}]
  %s2 = inlined_call_operand.hbm [shape: f32[1], index: 2, kind: output, shape index: {1}]
  %3 = xla_tuple %s1, %s2
  %s4 = sld [smem:[#allocation0]]
  $region22: #{_stage2_call.1} parent=0
    _
  %s6 = ssub.s32 1, %s4
  %s7 = scalar_select 0, %s6, %s4
  $region1: #{_stage2_call.1} parent=0
    #allocation2 [shape = 'u8[512]{0}', space=smem, size = 0x200, scoped, tag = 'output window, operand 1, single buffered']
    #allocation3 [shape = 's32[1]{0}', space=sflag, size = 0x4, scoped, tag = 'scoped memory for _stage2_call.1']
    %8 = vsyncpa [#allocation3], 0
    // Predicated region
    $region2: #{_stage2_call.1} parent=1 // pred_check
      _
    $region3: #{_stage2_call.1} parent=1 // pred_check_branch
      %10 = sbr.rel (0) target = $region5
    $region4: #{_stage2_call.1} parent=1 // pred_region
      _
    $region5: #{_stage2_call.1} parent=1 // pred_fallthru
      _
    %v11 = vld [vmem:[%s0] sm:$0x3]
    %s12 = scalar_lea.vmem %s0, 2
    %v13 = vld [vmem:[%s12] sm:$0x3]
    %vm14 = vcmask 1041408
    %v15 = vsel %vm14, %v13, 0.0
    %16 = vadd.xlane.f32.xlu0 %v15
    %v17 = vpop.xlane.xlu0 %16
    %v18 = vrot.slane %v17, 4
    %v19 = vadd.f32 %v17, %v18
    %v20 = vrot.slane %v19, 2
    %v21 = vadd.f32 %v19, %v20
    %v22 = vrot.slane %v21, 1
    %v23 = vadd.f32 %v21, %v22
    %s24 = vtos %v23
    %s25 = scalar_lea.smem [#allocation2], 0
    %26 = sst [smem:[%s25]] %s24
    %v27 = vsel %vm14, %v11, -inf
    %28 = vmax.xlane.f32.xlu0 %v27
    %v29 = vpop.xlane.xlu0 %28
    %v30 = vrot.slane %v29, 4
    %v31 = vmax.f32 %v29, %v30
    %v32 = vrot.slane %v31, 2
    %v33 = vmax.f32 %v31, %v32
    %v34 = vrot.slane %v33, 1
    %v35 = vmax.f32 %v33, %v34
    %s36 = vtos %v35
    %v37 = vstv %s36
    %v38 = vadd.f32 %v37, 1e-10
    %v39 = vrcp.pop %v38
    %v40 = vmul.f32 %v38, %v39
    %v41 = vsub.f32 1.0, %v40
    %v42 = vmul.f32 %v39, %v41
    %v43 = vadd.f32 %v39, %v42
    %vm44 = vweird.f32 %v38
    %vm45 = vweird.f32 %v39
    %vm46 = vmor %vm44, %vm45
    %v47 = vsel %vm46, %v39, %v43
    %v48 = vand.u32 2147483647, %v38
    %vm49 = vcmp.eq.f32.partialorder %v48, 8.507059e+37
    %v50 = vand.u32 %v38, 2147483648
    %v51 = vor.u32 1.1754944e-38, %v50
    %v52 = vsel %vm49, %v51, %v47
    %v53 = vsel %vm14, %v13, -inf
    %54 = vmax.xlane.f32.xlu0 %v53
    %v55 = vpop.xlane.xlu0 %54
    %v56 = vrot.slane %v55, 4
    %v57 = vmax.f32 %v55, %v56
    %v58 = vrot.slane %v57, 2
    %v59 = vmax.f32 %v57, %v58
    %v60 = vrot.slane %v59, 1
    %v61 = vmax.f32 %v59, %v60
    %s62 = vtos %v61
    %v63 = vstv %s62
    %v64 = vadd.f32 %v63, 1e-10
    %v65 = vrcp.pop %v64
    %v66 = vmul.f32 %v64, %v65
    %v67 = vsub.f32 1.0, %v66
    %v68 = vmul.f32 %v65, %v67
    %v69 = vadd.f32 %v65, %v68
    %vm70 = vweird.f32 %v64
    %vm71 = vweird.f32 %v65
    %vm72 = vmor %vm70, %vm71
    %v73 = vsel %vm72, %v65, %v69
    %v74 = vand.u32 2147483647, %v64
    %vm75 = vcmp.eq.f32.partialorder %v74, 8.507059e+37
    %v76 = vand.u32 %v64, 2147483648
    %v77 = vor.u32 1.1754944e-38, %v76
    %v78 = vsel %vm75, %v77, %v73
    %v79 = vmul.f32 %v11, %v52
    %80 = vst [vmem:[%s1] sm:$0x3] %v79
    %v81 = vmul.f32 %v13, %v78
    %s82 = scalar_lea.vmem %s1, 2
    %83 = vst [vmem:[%s82] sm:$0x3] %v81
    // Predicated region
    $region6: #{_stage2_call.1} parent=1 // pred_check
      _
    $region7: #{_stage2_call.1} parent=1 // pred_check_branch
      %85 = sbr.rel (0) target = $region9
    $region8: #{_stage2_call.1} parent=1 // pred_region
      _
    $region9: #{_stage2_call.1} parent=1 // pred_fallthru
      _
    // Predicated region
    $region10: #{_stage2_call.1} parent=1 // pred_check
      _
    $region11: #{_stage2_call.1} parent=1 // pred_check_branch
      %87 = sbr.rel (0) target = $region13
    $region12: #{_stage2_call.1} parent=1 // pred_region
      %89 = vsyncadd [#allocation3], 0
      %s91 = sshll.u32 %s2, 4
      %s92 = int_to_ptr.hbm [resolvable:$true] %s91
      %94 = dma.smem_to_hbm [#allocation2], 16, %s92, [#allocation3]
    $region13: #{_stage2_call.1} parent=1 // pred_fallthru
      _
    // Predicated region
    $region14: #{_stage2_call.1} parent=1 // pred_check
      _
    $region15: #{_stage2_call.1} parent=1 // pred_check_branch
      %96 = sbr.rel (0) target = $region17
    $region16: #{_stage2_call.1} parent=1 // pred_region
      _
    $region17: #{_stage2_call.1} parent=1 // pred_fallthru
      _
    // Predicated region
    $region18: #{_stage2_call.1} parent=1 // pred_check
      _
    $region19: #{_stage2_call.1} parent=1 // pred_check_branch
      %98 = sbr.rel (0) target = $region21
    $region20: #{_stage2_call.1} parent=1 // pred_region
      %100 = dma.done [#allocation3], 16
    $region21: #{_stage2_call.1} parent=1 // pred_fallthru
      _
    %101 = sfence
    %102 = vsyncpa [#allocation3], 1

</llo_original>
